<compile_context>
chip_gen: v6e
topology: v6e:2x2x1
jax: 0.10.0
libtpu: 0.0.40
codegen_flags: <defaults>
</compile_context>

<pallas_src>
import math

import jax
import jax.numpy as jnp
from jax.experimental import pallas as pl
from jax.experimental.pallas import tpu as pltpu

_LANES = 128
_MAX_BLOCK_ROWS = 512   # 512 x 128 f32 = 256 KiB per input block
_NUM_PARTS = 2          # leading "parallel" grid axis (v7x has 2 TensorCores)


def _cdiv(a, b):
    return -(-a // b)


def _round_up(a, m):
    return _cdiv(a, m) * m


# ---------------------------------------------------------------------------
# Pallas kernels: fused, weighted, segmented global sums.
# The (BLOCK_ROWS, 128) output block for part `p` stays resident in VMEM
# across the inner ("arbitrary") axis; w_ref is (BLOCK_ROWS, 1) and broadcasts
# over lanes.  No cross-lane reduce happens inside the kernel.
# ---------------------------------------------------------------------------
def _weighted_absdiff_sum_kernel(a_ref, b_ref, w_ref, o_ref):
    @pl.when(pl.program_id(1) == 0)
    def _():
        o_ref[...] = jnp.zeros_like(o_ref)

    o_ref[...] += jnp.abs(a_ref[...] - b_ref[...]) * w_ref[...]


def _weighted_sq_to_one_sum_kernel(x_ref, w_ref, o_ref):
    @pl.when(pl.program_id(1) == 0)
    def _():
        o_ref[...] = jnp.zeros_like(o_ref)

    d = x_ref[...] - 1.0
    o_ref[...] += (d * d) * w_ref[...]


# ---------------------------------------------------------------------------
# Static packing plan + slab builders (all shapes are static at trace time).
# ---------------------------------------------------------------------------
def _plan(shapes):
    """Per-segment sizes/rows and the fused slab geometry."""
    sizes = [max(1, math.prod(s)) for s in shapes]
    rows = [_cdiv(n, _LANES) for n in sizes]
    rows_data = sum(rows)
    block_rows = min(_MAX_BLOCK_ROWS, _round_up(rows_data, 8))
    n_blocks = _cdiv(rows_data, block_rows)
    steps = _cdiv(n_blocks, _NUM_PARTS)            # inner ("arbitrary") extent
    total_rows = _NUM_PARTS * steps * block_rows   # slab rows incl. filler
    return sizes, rows, block_rows, steps, total_rows


def _pack_slab(tensors, sizes, rows, total_rows, pad_value):
    """Flatten + concatenate all segments into one (total_rows, 128) f32 slab.

    Lane tails and the trailing filler use `pad_value` so padded elements
    contribute exactly zero; everything is built in one concatenate (a single
    128-divisible tensor is a free reshape).
    """
    # TODO(synk): DMA bf16/f16 inputs natively and cast inside the kernel
    # instead of upcasting to f32 here (halves HBM read traffic for bf16).
    pieces = []
    for x, n, r in zip(tensors, sizes, rows):
        pieces.append(jnp.asarray(x, jnp.float32).reshape(-1))
        tail = r * _LANES - n
        if tail:
            pieces.append(jnp.full((tail,), pad_value, jnp.float32))
    fill = (total_rows - sum(rows)) * _LANES
    if fill:
        pieces.append(jnp.full((fill,), pad_value, jnp.float32))
    flat = pieces[0] if len(pieces) == 1 else jnp.concatenate(pieces)
    return flat.reshape(total_rows, _LANES)


def _pack_weights(sizes, rows, total_rows):
    """(total_rows, 1) per-row weights: 1/n_i on segment i's rows, 0 on filler."""
    pieces = [jnp.full((r,), 1.0 / n, jnp.float32) for n, r in zip(sizes, rows)]
    fill = total_rows - sum(rows)
    if fill:
        pieces.append(jnp.zeros((fill,), jnp.float32))
    w = pieces[0] if len(pieces) == 1 else jnp.concatenate(pieces)
    return w.reshape(total_rows, 1)


def _launch(kernel, data_slabs, w_slab, block_rows, steps):
    grid = (_NUM_PARTS, steps)
    data_spec = pl.BlockSpec((block_rows, _LANES),
                             lambda p, i: (p * steps + i, 0))
    w_spec = pl.BlockSpec((block_rows, 1), lambda p, i: (p * steps + i, 0))
    partials = pl.pallas_call(
        kernel,
        out_shape=jax.ShapeDtypeStruct((_NUM_PARTS * block_rows, _LANES),
                                       jnp.float32),
        grid=grid,
        in_specs=[data_spec] * len(data_slabs) + [w_spec],
        out_specs=pl.BlockSpec((block_rows, _LANES), lambda p, i: (p, 0)),
        compiler_params=pltpu.CompilerParams(
            dimension_semantics=("parallel", "arbitrary")),
    )(*data_slabs, w_slab)
    return jnp.sum(partials)


def _sum_of_mean_abs_diff(a_list, b_list):
    """sum_i mean(|a_i - b_i|), fused into a single kernel launch."""
    sizes, rows, block_rows, steps, total_rows = _plan([a.shape for a in a_list])
    a_slab = _pack_slab(a_list, sizes, rows, total_rows, 0.0)
    b_slab = _pack_slab(b_list, sizes, rows, total_rows, 0.0)
    w_slab = _pack_weights(sizes, rows, total_rows)
    return _launch(_weighted_absdiff_sum_kernel, [a_slab, b_slab], w_slab,
                   block_rows, steps)


def _sum_of_mean_sq_to_one(x_list):
    """sum_i mean((x_i - 1)^2), fused into a single kernel launch."""
    sizes, rows, block_rows, steps, total_rows = _plan([x.shape for x in x_list])
    x_slab = _pack_slab(x_list, sizes, rows, total_rows, 1.0)
    w_slab = _pack_weights(sizes, rows, total_rows)
    return _launch(_weighted_sq_to_one_sum_kernel, [x_slab], w_slab,
                   block_rows, steps)


# ---------------------------------------------------------------------------
# GeneratorLoss (forward semantics of the PyTorch module)
# ---------------------------------------------------------------------------
class GeneratorLoss:
    def __init__(self, l_fm, l_mel):
        self.l_fm = l_fm
        self.l_mel = l_mel

    def __call__(self, real_features, real_specs, gen_outputs, gen_features,
                 gen_specs):
        adv_loss = self.adv_loss(gen_outputs)
        fm_loss = self.fm_loss(real_features, gen_features)
        mel_loss = self.mel_loss(real_specs, gen_specs)
        loss = adv_loss + self.l_fm * fm_loss + self.l_mel * mel_loss
        return {'loss': loss, 'adv_loss': adv_loss,
                'fm_loss': fm_loss, 'mel_loss': mel_loss}

    def adv_loss(self, gen_outputs):
        # sum_d mean((gen_out_d - 1)^2) — all discriminators in one kernel.
        return _sum_of_mean_sq_to_one(list(gen_outputs))

    def fm_loss(self, real_features, gen_features):
        # TODO(synk): pad_tensors_to_match only matters for ragged real/gen
        # shapes; feature maps here share shapes so the padding is the identity.
        reals = [f for sub in real_features for f in sub]
        gens = [f for sub in gen_features for f in sub]
        return _sum_of_mean_abs_diff(reals, gens)

    def mel_loss(self, real_specs, gen_specs):
        # NB: the PyTorch reference pads but then takes the mean over the
        # *unpadded* specs; reproduced faithfully (specs share a shape here).
        return _sum_of_mean_abs_diff([real_specs], [gen_specs])


# ---------------------------------------------------------------------------
if __name__ == "__main__":
    key = jax.random.PRNGKey(0)

    B = 2                       # batch
    n_mels, T_spec = 32, 8      # mel spectrogram (B, n_mels, T)
    feat_shapes = [(B, 4, 16, 16), (B, 8, 8, 16), (B, 16, 4, 16)]  # NCHW
    out_shape_d = (B, 1, 16)    # per-discriminator logits
    n_disc = 2                  # number of sub-discriminators

    keys = iter(jax.random.split(key, 64))

    gen_outputs = [jax.random.normal(next(keys), out_shape_d, jnp.float32)
                   for _ in range(n_disc)]
    real_features = [[jax.random.normal(next(keys), s, jnp.float32)
                      for s in feat_shapes] for _ in range(n_disc)]
    gen_features = [[jax.random.normal(next(keys), s, jnp.float32)
                     for s in feat_shapes] for _ in range(n_disc)]
    real_specs = jax.random.normal(next(keys), (B, n_mels, T_spec), jnp.float32)
    gen_specs = jax.random.normal(next(keys), (B, n_mels, T_spec), jnp.float32)

    loss_fn = GeneratorLoss(l_fm=2.0, l_mel=45.0)
    out = loss_fn(real_features, real_specs, gen_outputs, gen_features,
                  gen_specs)
    out = jax.block_until_ready(out)

    # Pure-JAX reference check.
    ref_adv = sum(jnp.mean((g - 1.0) ** 2) for g in gen_outputs)
    ref_fm = sum(jnp.mean(jnp.abs(r - g))
                 for rs, gs in zip(real_features, gen_features)
                 for r, g in zip(rs, gs))
    ref_mel = jnp.mean(jnp.abs(real_specs - gen_specs))
    ref_loss = ref_adv + 2.0 * ref_fm + 45.0 * ref_mel

    assert jnp.allclose(out['adv_loss'], ref_adv, rtol=1e-5, atol=1e-5)
    assert jnp.allclose(out['fm_loss'], ref_fm, rtol=1e-5, atol=1e-5)
    assert jnp.allclose(out['mel_loss'], ref_mel, rtol=1e-5, atol=1e-5)
    assert jnp.allclose(out['loss'], ref_loss, rtol=1e-5, atol=1e-5)

    print("KERNEL_OK")
</pallas_src>

<mosaic_0001>
module attributes {stable_mosaic.version = 11 : i64} {
  func.func @_weighted_sq_to_one_sum_kernel(%arg0: i32, %arg1: i32, %arg2: memref<8x128xf32, #tpu.memory_space<vmem>>, %arg3: memref<8x1xf32, #tpu.memory_space<vmem>>, %arg4: memref<8x128xf32, #tpu.memory_space<vmem>>) attributes {dimension_semantics = [#tpu.dimension_semantics<parallel>, #tpu.dimension_semantics<arbitrary>], iteration_bounds = array<i64: 2, 1>, scalar_prefetch = 0 : i64, scratch_operands = 0 : i64, tpu.core_type = #tpu.core_type<tc>, window_params = [{transform_indices = @transform_0, window_bounds = array<i64: 8, 128>}, {transform_indices = @transform_1, window_bounds = array<i64: 8, 1>}, {transform_indices = @transform_2, window_bounds = array<i64: 8, 128>}]} {
    %c0_i32 = arith.constant 0 : i32
    %0 = arith.cmpi eq, %arg1, %c0_i32 : i32
    %1 = arith.extui %0 : i1 to i32
    %c0_i32_0 = arith.constant 0 : i32
    %2 = arith.cmpi ne, %1, %c0_i32_0 : i32
    scf.if %2 {
      %cst_8 = arith.constant 0.000000e+00 : f32
      %13 = vector.broadcast %cst_8 : f32 to vector<8x128xf32>
      %c0_9 = arith.constant 0 : index
      %c0_10 = arith.constant 0 : index
      %14 = vector.load %arg4[%c0_9, %c0_10] : memref<8x128xf32, #tpu.memory_space<vmem>>, vector<8x128xf32>
      tpu.vector_store %arg4[%c0_9, %c0_10], %13 {strides = array<i32>} : memref<8x128xf32, #tpu.memory_space<vmem>>, vector<8x128xf32>,
    } else {
    }
    %c0 = arith.constant 0 : index
    %c0_1 = arith.constant 0 : index
    %3 = vector.load %arg2[%c0, %c0_1] : memref<8x128xf32, #tpu.memory_space<vmem>>, vector<8x128xf32>
    %cst = arith.constant 1.000000e+00 : f32
    %4 = vector.broadcast %cst : f32 to vector<8x128xf32>
    %5 = arith.subf %3, %4 : vector<8x128xf32>
    %c0_2 = arith.constant 0 : index
    %c0_3 = arith.constant 0 : index
    %6 = vector.load %arg4[%c0_2, %c0_3] : memref<8x128xf32, #tpu.memory_space<vmem>>, vector<8x128xf32>
    %7 = arith.mulf %5, %5 : vector<8x128xf32>
    %c0_4 = arith.constant 0 : index
    %c0_5 = arith.constant 0 : index
    %8 = vector.load %arg3[%c0_4, %c0_5] : memref<8x1xf32, #tpu.memory_space<vmem>>, vector<8x1xf32>
    %9 = vector.broadcast %8 : vector<8x1xf32> to vector<8x128xf32>
    %10 = arith.mulf %7, %9 : vector<8x128xf32>
    %11 = arith.addf %6, %10 : vector<8x128xf32>
    %c0_6 = arith.constant 0 : index
    %c0_7 = arith.constant 0 : index
    %12 = vector.load %arg4[%c0_6, %c0_7] : memref<8x128xf32, #tpu.memory_space<vmem>>, vector<8x128xf32>
    tpu.vector_store %arg4[%c0_6, %c0_7], %11 {strides = array<i32>} : memref<8x128xf32, #tpu.memory_space<vmem>>, vector<8x128xf32>,
    return
  }
  func.func @transform_0(%arg0: i32, %arg1: i32) -> (i32, i32) {
    %c1_i32 = arith.constant 1 : i32
    %0 = arith.muli %arg0, %c1_i32 : i32
    %1 = arith.addi %0, %arg1 : i32
    %c0_i32 = arith.constant 0 : i32
    %c0_i32_0 = arith.constant 0 : i32
    return %1, %c0_i32 : i32, i32
  }
  func.func @transform_1(%arg0: i32, %arg1: i32) -> (i32, i32) {
    %c1_i32 = arith.constant 1 : i32
    %0 = arith.muli %arg0, %c1_i32 : i32
    %1 = arith.addi %0, %arg1 : i32
    %c0_i32 = arith.constant 0 : i32
    %c0_i32_0 = arith.constant 0 : i32
    return %1, %c0_i32 : i32, i32
  }
  func.func @transform_2(%arg0: i32, %arg1: i32) -> (i32, i32) {
    %c0_i32 = arith.constant 0 : i32
    %c0_i32_0 = arith.constant 0 : i32
    return %arg0, %c0_i32 : i32, i32
  }
}

</mosaic_0001>

<llo_original>
// kernel: tpu_custom_call.1
$region0: #{tpu_custom_call.1}
  #allocation0 [shape = 'u32[]', space=smem, size = 0x4, offset = 0x4, fixed_abs, tag = 'smem constant byte address 0x4 - core index']
  #allocation1 [shape = 'u32[144,128]{1,0:T(1,128)}', space=vmem, size = 0x12000, scoped, tag = 'internal scratch']
  %s0 = inlined_call_operand.vmem [shape: f32[16,128], index: 0, kind: input, shape index: {}]
  %s1 = inlined_call_operand.vmem [shape: f32[16,1], index: 1, kind: input, shape index: {}]
  %s2 = inlined_call_operand.hbm [shape: f32[16,128], index: 2, kind: output, shape index: {}]
  %s3 = sld [smem:[#allocation0]]
  $region45: #{tpu_custom_call.1} parent=0
    _
  %s5 = ssub.s32 1, %s3
  %s6 = scalar_select 0, %s5, %s3
  $region1: #{tpu_custom_call.1} parent=0
    #allocation2 [shape = 'u8[8192]{0}', space=vmem, size = 0x2000, scoped, tag = 'output window, operand 0']
    #allocation3 [shape = 's32[2]{0}', space=sflag, size = 0x8, scoped, tag = 'scoped memory for tpu_custom_call.1']
    %7 = vsyncpa [#allocation3], 0
    %s8 = scalar_lea.sflag [#allocation3], 1
    %9 = vsyncpa %s8, 0
    loop: start=0, step=1, limit=4
    $region2: #{tpu_custom_call.1} parent=1 // loop_pre_header
      _
    $region3: #{tpu_custom_call.1} parent=1 // loop_header
      %s11 = sphi 0, %s15
      %p12 = scmp.ge.s32.totalorder %s11, 4
      %s18 = sphi 0, %s30
      %s19 = sphi 0, %s26
      %s20 = sphi 0, %s18
      %s21 = sphi 0, %s19
      %s22 = sphi 0, %s20
      %s23 = sphi 0, %s21
      %s35 = sphi 0, %s37
      %s38 = sphi 0, %s35
      %s39 = sphi 0, %s38
      %s55 = sphi 0, %s39
      %s63 = sphi 0, %s65
      %s66 = sphi 0, %s63
      %s67 = sphi 0, %s66
      %s83 = sphi 0, %s67
      %s89 = sphi 0, %s91
      %s92 = sphi 0, %s89
      %s93 = sphi 0, %s92
      %s109 = sphi 0, %s93
    $region4: #{tpu_custom_call.1} parent=1 // loop_header_branch
      %14 = sbr.rel (%p12) target = $region8
    $region5: #{tpu_custom_call.1} parent=1 // loop_body
      %s16 = ssub.s32 %s11, 1
      %s17 = ssub.s32 %s11, 2
      %s24 = sadd.s32 1, %s19
      %p25 = scmp.ge.s32.totalorder %s24, 1
      %s26 = scalar_select %p25, 0, %s24
      %s27 = sadd.s32 1, %s18
      %s28 = scalar_select %p25, %s27, %s18
      %p29 = scmp.ge.s32.totalorder %s28, 2
      %s30 = scalar_select %p29, 0, %s28
      %s31 = sadd.s32 %s18, %s19
      %s32 = sadd.s32 %s30, %s26
      %s33 = ssub.s32 %s31, %s32
      %p34 = scmp.eq.s32.totalorder %s33, 0
      %s36 = sadd.s32 %s35, 1
      %s37 = scalar_select %p34, %s35, %s36
      %p40 = pneg %p34
      %p41 = scmp.eq.s32.totalorder %s11, 1
      %p42 = por %p40, %p41
      %p43 = scmp.ne.s32.totalorder %s35, %s38
      %p44 = scmp.eq.s32.totalorder %s11, 0
      %p45 = por %p43, %p44
      %p46 = scmp.ne.s32.totalorder %s35, %s38
      %p47 = scmp.eq.s32.totalorder %s16, 1
      %p48 = por %p46, %p47
      %p49 = scmp.ne.s32.totalorder %s38, %s39
      %p50 = scmp.eq.s32.totalorder %s16, 0
      %p51 = por %p49, %p50
      %p52 = scmp.ne.s32.totalorder %s38, %s39
      %p53 = scmp.eq.s32.totalorder %s17, 1
      %p54 = por %p52, %p53
      %p56 = scmp.ne.s32.totalorder %s39, %s55
      %p57 = scmp.eq.s32.totalorder %s17, 0
      %p58 = por %p56, %p57
      %s59 = sadd.s32 %s18, %s19
      %s60 = sadd.s32 %s30, %s26
      %s61 = ssub.s32 %s59, %s60
      %p62 = scmp.eq.s32.totalorder %s61, 0
      %s64 = sadd.s32 %s63, 1
      %s65 = scalar_select %p62, %s63, %s64
      %p68 = pneg %p62
      %p69 = scmp.eq.s32.totalorder %s11, 1
      %p70 = por %p68, %p69
      %p71 = scmp.ne.s32.totalorder %s63, %s66
      %p72 = scmp.eq.s32.totalorder %s11, 0
      %p73 = por %p71, %p72
      %p74 = scmp.ne.s32.totalorder %s63, %s66
      %p75 = scmp.eq.s32.totalorder %s16, 1
      %p76 = por %p74, %p75
      %p77 = scmp.ne.s32.totalorder %s66, %s67
      %p78 = scmp.eq.s32.totalorder %s16, 0
      %p79 = por %p77, %p78
      %p80 = scmp.ne.s32.totalorder %s66, %s67
      %p81 = scmp.eq.s32.totalorder %s17, 1
      %p82 = por %p80, %p81
      %p84 = scmp.ne.s32.totalorder %s67, %s83
      %p85 = scmp.eq.s32.totalorder %s17, 0
      %p86 = por %p84, %p85
      %s87 = ssub.s32 %s18, %s30
      %p88 = scmp.eq.s32.totalorder %s87, 0
      %s90 = sadd.s32 %s89, 1
      %s91 = scalar_select %p88, %s89, %s90
      %p94 = pneg %p88
      %p95 = scmp.eq.s32.totalorder %s11, 1
      %p96 = por %p94, %p95
      %p97 = scmp.ne.s32.totalorder %s89, %s92
      %p98 = scmp.eq.s32.totalorder %s11, 0
      %p99 = por %p97, %p98
      %p100 = scmp.ne.s32.totalorder %s89, %s92
      %p101 = scmp.eq.s32.totalorder %s16, 1
      %p102 = por %p100, %p101
      %p103 = scmp.ne.s32.totalorder %s92, %s93
      %p104 = scmp.eq.s32.totalorder %s16, 0
      %p105 = por %p103, %p104
      %p106 = scmp.ne.s32.totalorder %s92, %s93
      %p107 = scmp.eq.s32.totalorder %s17, 1
      %p108 = por %p106, %p107
      %p110 = scmp.ne.s32.totalorder %s93, %s109
      %p111 = scmp.eq.s32.totalorder %s17, 0
      %p112 = por %p110, %p111
      %p113 = scmp.le.s32.totalorder 1, %s11
      %p114 = scmp.lt.s32.totalorder %s11, 3
      %p115 = pnand %p113, %p114
      %p116 = pneg %p115
      // Predicated region
      $region9: #{tpu_custom_call.1} parent=5 // pred_check
        _
      $region10: #{tpu_custom_call.1} parent=5 // pred_check_branch
        %118 = sbr.rel (%p115) target = $region12
      $region11: #{tpu_custom_call.1} parent=5 // pred_region
        %s119 = ssub.s32 %s11, 1
      $region12: #{tpu_custom_call.1} parent=5 // pred_fallthru
        _
      %p120 = scmp.lt.s32.totalorder %s11, 2
      // Predicated region
      $region13: #{tpu_custom_call.1} parent=5 // pred_check
        %p121 = pneg %p120
      $region14: #{tpu_custom_call.1} parent=5 // pred_check_branch
        %123 = sbr.rel (%p121) target = $region16
      $region15: #{tpu_custom_call.1} parent=5 // pred_region
        // Predicated region
        $region17: #{tpu_custom_call.1} parent=15 // pred_check
          %p124 = pneg %p45
        $region18: #{tpu_custom_call.1} parent=15 // pred_check_branch
          %126 = sbr.rel (%p124) target = $region20
        $region19: #{tpu_custom_call.1} parent=15 // pred_region
          %s127 = sadd.s32 %s18, %s19
          %p128 = scmp.lt.s32.totalorder %s127, 1
          %s129 = scalar_select %p128, %s127, 1
          %s130 = smul.addr %s129, 8
          %s131 = scalar_lea.vmem %s0, %s130
          %s132 = sadd.s32 %s18, %s19
        $region20: #{tpu_custom_call.1} parent=15 // pred_fallthru
          _
        // Predicated region
        $region21: #{tpu_custom_call.1} parent=15 // pred_check
          %p133 = pneg %p73
        $region22: #{tpu_custom_call.1} parent=15 // pred_check_branch
          %135 = sbr.rel (%p133) target = $region24
        $region23: #{tpu_custom_call.1} parent=15 // pred_region
          %s136 = sadd.s32 %s18, %s19
          %p137 = scmp.lt.s32.totalorder %s136, 1
          %s138 = scalar_select %p137, %s136, 1
          %s139 = smul.addr %s138, 8
          %s140 = scalar_lea.vmem %s1, %s139
          %s141 = sadd.s32 %s18, %s19
        $region24: #{tpu_custom_call.1} parent=15 // pred_fallthru
          _
      $region16: #{tpu_custom_call.1} parent=5 // pred_fallthru
        _
      %p142 = scmp.le.s32.totalorder 1, %s11
      %p143 = scmp.lt.s32.totalorder %s11, 3
      %p144 = pnand %p142, %p143
      %p145 = pneg %p144
      // Predicated region
      $region25: #{tpu_custom_call.1} parent=5 // pred_check
        _
      $region26: #{tpu_custom_call.1} parent=5 // pred_check_branch
        %147 = sbr.rel (%p144) target = $region28
      $region27: #{tpu_custom_call.1} parent=5 // pred_region
        %s148 = ssub.s32 %s11, 1
        %s149 = sadd.s32 %s20, %s21
        %p150 = scmp.lt.s32.totalorder %s149, 1
        %s151 = scalar_select %p150, %s149, 1
        %s152 = smul.addr %s151, 8
        %s153 = scalar_lea.vmem %s0, %s152
        %p154 = pneg %p51
        %p155 = pneg %p48
        %s156 = sadd.s32 %s20, %s21
        %p157 = scmp.lt.s32.totalorder %s156, 1
        %s158 = scalar_select %p157, %s156, 1
        %s159 = smul.addr %s158, 8
        %s160 = scalar_lea.vmem %s1, %s159
        %p161 = pneg %p79
        %p162 = pneg %p76
        %p163 = pneg %p105
        %p164 = pneg %p102
        %s165 = sand.u32 %s92, 1
        %s166 = scalar_lea.sflag [#allocation3], %s165
        %s167 = sand.u32 %s92, 1
        %s168 = smul.addr %s167, 8
        %s169 = scalar_lea.vmem [#allocation2], %s168
        %s170 = sadd.s32 %s20, %s21
        %p171 = scmp.lt.s32.totalorder %s170, 1
        %s172 = scalar_select %p171, %s170, 1
        %s173 = smul.addr %s172, 8
        %s174 = scalar_lea.vmem %s0, %s173
        %s175 = sadd.s32 %s20, %s21
        %s176 = sadd.s32 %s20, %s21
        %p177 = scmp.lt.s32.totalorder %s176, 1
        %s178 = scalar_select %p177, %s176, 1
        %s179 = smul.addr %s178, 8
        %s180 = scalar_lea.vmem %s1, %s179
        %s181 = sadd.s32 %s20, %s21
        %p182 = scmp.eq.s32.totalorder %s21, 0
        // Predicated region
        $region29: #{tpu_custom_call.1} parent=27 // pred_check
          %p183 = pneg %p182
        $region30: #{tpu_custom_call.1} parent=27 // pred_check_branch
          %185 = sbr.rel (%p183) target = $region32
        $region31: #{tpu_custom_call.1} parent=27 // pred_region
          %186 = vst [vmem:[%s169] sm:$0xff] 0.0
        $region32: #{tpu_custom_call.1} parent=27 // pred_fallthru
          _
        %v187 = vld [vmem:[%s174] sm:$0xff]
        %v188 = vsub.f32 %v187, 1.0
        %v189 = vld [vmem:[%s169] sm:$0xff]
        %v190 = vmul.f32 %v188, %v188
        %v191 = vld [vmem:[%s180] sm:$0xff]
        %193 = vset.pattern.permute.xlu0 0
        %194 = vperm.xlu0 %193, %v191
        %v195 = vpop.permute.xlu0 %194
        %v197 = vmul.f32 %v190, %v195
        %v198 = vadd.f32 %v189, %v197
        %199 = vst [vmem:[%s169] sm:$0xff] %v198
        %s200 = sand.u32 %s92, 1
        %s201 = scalar_lea.sflag [#allocation3], %s200
        %s202 = sand.u32 %s92, 1
        %s203 = smul.addr %s202, 8
        %s204 = scalar_lea.vmem [#allocation2], %s203
        // Predicated region
        $region33: #{tpu_custom_call.1} parent=27 // pred_check
          %p205 = pneg %p102
        $region34: #{tpu_custom_call.1} parent=27 // pred_check_branch
          %207 = sbr.rel (%p205) target = $region36
        $region35: #{tpu_custom_call.1} parent=27 // pred_region
          %s209 = ssub.s32 128, 128
          %210 = vsyncadd %s201, %s209
          %s211 = smul.addr %s20, 128
          %s212 = scalar_lea.hbm %s2, %s211
          %s214 = sshll.u32 %s204, 4
          %s215 = int_to_ptr.vmem [resolvable:$true] %s214
          %217 = dma.vmem_to_hbm [thread:$0]  %s215, 128, %s212, %s201
        $region36: #{tpu_custom_call.1} parent=27 // pred_fallthru
          _
      $region28: #{tpu_custom_call.1} parent=5 // pred_fallthru
        _
      %p218 = scmp.le.s32.totalorder 2, %s11
      // Predicated region
      $region37: #{tpu_custom_call.1} parent=5 // pred_check
        %p219 = pneg %p218
      $region38: #{tpu_custom_call.1} parent=5 // pred_check_branch
        %221 = sbr.rel (%p219) target = $region40
      $region39: #{tpu_custom_call.1} parent=5 // pred_region
        %s222 = ssub.s32 %s11, 2
        // Predicated region
        $region41: #{tpu_custom_call.1} parent=39 // pred_check
          %p223 = pneg %p108
        $region42: #{tpu_custom_call.1} parent=39 // pred_check_branch
          %225 = sbr.rel (%p223) target = $region44
        $region43: #{tpu_custom_call.1} parent=39 // pred_region
          %s226 = sand.u32 %s93, 1
          %s227 = scalar_lea.sflag [#allocation3], %s226
          %s228 = sand.u32 %s93, 1
          %s229 = smul.addr %s228, 8
          %s230 = scalar_lea.vmem [#allocation2], %s229
          %231 = dma.done %s227, 128
        $region44: #{tpu_custom_call.1} parent=39 // pred_fallthru
          _
      $region40: #{tpu_custom_call.1} parent=5 // pred_fallthru
        _
    $region6: #{tpu_custom_call.1} parent=1 // loop_footer
      %s15 = sadd.s32 1, %s11
    $region7: #{tpu_custom_call.1} parent=1 // loop_footer_branch
      %10 = sbr.rel target = $region3
    $region8: #{tpu_custom_call.1} parent=1 // loop_exit
      _
    %232 = vsyncpa [#allocation3], 1
    %s233 = scalar_lea.sflag [#allocation3], 1
    %234 = vsyncpa %s233, 1

</llo_original>
